<compile_context>
chip_gen: v7x
topology: tpu7x:2x2x1
jax: 0.10.0
libtpu: 0.0.40
codegen_flags: <defaults>
</compile_context>

<pallas_src>
import functools

import jax
import jax.numpy as jnp
from jax.experimental import pallas as pl
from jax.experimental.pallas import tpu as pltpu

LEAKY_SLOPE = 0.01  # PyTorch nn.LeakyReLU() default negative_slope


def _round_up(x, m):
    return (x + m - 1) // m * m


def _critic_mlp_kernel(x_ref, w_ref, b_ref, o_ref, *, num_layers):
    """x_ref: (TB, P) bf16, w_ref: (L, P, P) bf16, b_ref: (L, 1, P) f32,
    o_ref: (TB, P) f32.

    Computes:  h = x
               for l in 0..L-2:  h = leaky_relu(h @ W_l + b_l)
               out = h @ W_{L-1} + b_{L-1}
    bf16 MXU inputs, f32 accumulation, f32 elementwise (bias / LeakyReLU).
    """
    h = x_ref[...]  # bf16 (TB, P)
    for l in range(num_layers):
        w = w_ref[l]          # (P, P) bf16, static index -> no dynamic slice
        b = b_ref[l]          # (1, P) f32, broadcasts over batch
        acc = jnp.dot(h, w, preferred_element_type=jnp.float32) + b
        if l < num_layers - 1:
            acc = jnp.where(acc > 0, acc, LEAKY_SLOPE * acc)   # LeakyReLU in f32
            h = acc.astype(jnp.bfloat16)                        # bf16 only for MXU
        else:
            o_ref[...] = acc


def critic_forward(obs_list, actions_list, params, *, tile_batch=256):
    """params: list of (W, b) with W shape (in, out), b shape (out,).

    Matches CriticNet.forward: q = MLP(concat(concat(obs), concat(actions))).
    """
    num_layers = len(params)
    feat_dims = [params[0][0].shape[0]] + [w.shape[1] for (w, _) in params]
    out_dim = feat_dims[-1]
    in_dim = feat_dims[0]
    P = _round_up(max(feat_dims), 128)          # common lane-aligned width

    # --- pack params into one weight slab + one bias slab (zero padded) ------
    # TODO(synk): in production, pre-pack these slabs once outside the step fn.
    w_slab = jnp.zeros((num_layers, P, P), jnp.bfloat16)
    b_slab = jnp.zeros((num_layers, 1, P), jnp.float32)
    for l, (w, b) in enumerate(params):
        w_slab = w_slab.at[l, : w.shape[0], : w.shape[1]].set(w.astype(jnp.bfloat16))
        b_slab = b_slab.at[l, 0, : b.shape[0]].set(b.astype(jnp.float32))

    # --- glue: concat(obs) ++ concat(actions) ++ zero lane padding, one op ---
    batch = obs_list[0].shape[0]
    pieces = list(obs_list) + list(actions_list)
    if P > in_dim:
        pieces.append(jnp.zeros((batch, P - in_dim), jnp.float32))
    x = jnp.concatenate(pieces, axis=1).astype(jnp.bfloat16)      # (batch, P)

    # --- batch tiling: TB multiple of 8 sublanes, pad batch to a TB multiple --
    TB = min(tile_batch, _round_up(batch, 8))
    b_pad = _round_up(batch, TB)
    if b_pad > batch:
        x = jnp.pad(x, ((0, b_pad - batch), (0, 0)))
    grid = (b_pad // TB,)

    kernel = functools.partial(_critic_mlp_kernel, num_layers=num_layers)

    out = pl.pallas_call(
        kernel,
        out_shape=jax.ShapeDtypeStruct((b_pad, P), jnp.float32),
        grid=grid,
        in_specs=[
            pl.BlockSpec((TB, P), lambda i: (i, 0)),                   # x: batch-blocked
            pl.BlockSpec((num_layers, P, P), lambda i: (0, 0, 0)),     # weights: pinned
            pl.BlockSpec((num_layers, 1, P), lambda i: (0, 0, 0)),     # biases:  pinned
        ],
        out_specs=pl.BlockSpec((TB, P), lambda i: (i, 0)),
        compiler_params=pltpu.CompilerParams(
            dimension_semantics=("parallel",),   # shard batch across TCs on v7x
        ),
    )(x, w_slab, b_slab)

    return out[:batch, :out_dim]


def init_params(key, input_dim, hidden_dims, output_dim):
    """Deterministic synthetic init (uniform, PyTorch-Linear-like fan_in bound)."""
    dims = [input_dim] + list(hidden_dims) + [output_dim]
    params = []
    for i in range(len(dims) - 1):
        key, kw, kb = jax.random.split(key, 3)
        bound = 1.0 / jnp.sqrt(dims[i])
        w = jax.random.uniform(kw, (dims[i], dims[i + 1]), jnp.float32, -bound, bound)
        b = jax.random.uniform(kb, (dims[i + 1],), jnp.float32, -bound, bound)
        params.append((w, b))
    return params


if __name__ == "__main__":
    key = jax.random.PRNGKey(0)

    # Small multi-agent setup: 2 agents, obs dim 8 each, action dim 4 each.
    batch = 2
    obs_dims = [8, 8]
    act_dims = [4, 4]
    input_dim = sum(obs_dims) + sum(act_dims)   # 24 (CriticNet sees concat of all obs + actions)
    hidden_dims = [32, 32]
    output_dim = 1

    key, *ks = jax.random.split(key, 1 + len(obs_dims) + len(act_dims))
    obs_list = [jax.random.normal(ks[i], (batch, d), jnp.float32)
                for i, d in enumerate(obs_dims)]
    actions_list = [jax.random.normal(ks[len(obs_dims) + i], (batch, d), jnp.float32)
                    for i, d in enumerate(act_dims)]

    key, pkey = jax.random.split(key)
    params = init_params(pkey, input_dim, hidden_dims, output_dim)

    q = critic_forward(obs_list, actions_list, params)
    q = jax.block_until_ready(q)
    assert q.shape == (batch, output_dim) and q.dtype == jnp.float32

    # Reference check in plain f32 JAX (kernel uses bf16 matmul inputs -> loose tol).
    x = jnp.concatenate(
        [jnp.concatenate(obs_list, axis=1), jnp.concatenate(actions_list, axis=1)], axis=1)
    h = x
    for i, (w, b) in enumerate(params):
        h = h @ w + b
        if i < len(params) - 1:
            h = jnp.where(h > 0, h, LEAKY_SLOPE * h)
    assert jnp.allclose(q, h, atol=3e-2, rtol=3e-2), (q, h)

    print("KERNEL_OK")
</pallas_src>

<mosaic_0001>
module attributes {stable_mosaic.version = 11 : i64} {
  func.func @_critic_mlp_kernel(%arg0: i32, %arg1: memref<8x128xbf16, #tpu.memory_space<vmem>>, %arg2: memref<3x128x128xbf16, #tpu.memory_space<vmem>>, %arg3: memref<3x1x128xf32, #tpu.memory_space<vmem>>, %arg4: memref<8x128xf32, #tpu.memory_space<vmem>>) attributes {dimension_semantics = [#tpu.dimension_semantics<parallel>], iteration_bounds = array<i64: 1>, scalar_prefetch = 0 : i64, scratch_operands = 0 : i64, tpu.core_type = #tpu.core_type<tc>, window_params = [{transform_indices = @transform_0, window_bounds = array<i64: 8, 128>}, {pipeline_mode = #tpu.pipeline_mode<synchronous>, transform_indices = @transform_1, window_bounds = array<i64: 3, 128, 128>}, {pipeline_mode = #tpu.pipeline_mode<synchronous>, transform_indices = @transform_2, window_bounds = array<i64: 3, 1, 128>}, {transform_indices = @transform_3, window_bounds = array<i64: 8, 128>}]} {
    %c0 = arith.constant 0 : index
    %c0_0 = arith.constant 0 : index
    %0 = vector.load %arg1[%c0, %c0_0] : memref<8x128xbf16, #tpu.memory_space<vmem>>, vector<8x128xbf16>
    %c0_1 = arith.constant 0 : index
    %c0_2 = arith.constant 0 : index
    %c0_3 = arith.constant 0 : index
    %1 = vector.load %arg2[%c0_1, %c0_2, %c0_3] : memref<3x128x128xbf16, #tpu.memory_space<vmem>>, vector<1x128x128xbf16>
    %2 = vector.shape_cast %1 : vector<1x128x128xbf16> to vector<128x128xbf16>
    %c0_4 = arith.constant 0 : index
    %c0_5 = arith.constant 0 : index
    %c0_6 = arith.constant 0 : index
    %3 = vector.load %arg3[%c0_4, %c0_5, %c0_6] : memref<3x1x128xf32, #tpu.memory_space<vmem>>, vector<1x1x128xf32>
    %4 = vector.shape_cast %3 : vector<1x1x128xf32> to vector<1x128xf32>
    %cst = arith.constant dense<0.000000e+00> : vector<8x128xf32>
    %5 = tpu.matmul %0, %2, %cst {dimension_numbers = #tpu.dot_dimension_numbers<[1], [0], [0], [1], [0, 0, 1, 1], [], []>} : vector<8x128xbf16>, vector<128x128xbf16>, vector<8x128xf32> -> vector<8x128xf32>
    %6 = vector.broadcast %4 : vector<1x128xf32> to vector<8x128xf32>
    %7 = arith.addf %5, %6 : vector<8x128xf32>
    %cst_7 = arith.constant 0.000000e+00 : f32
    %8 = vector.broadcast %cst_7 : f32 to vector<8x128xf32>
    %9 = arith.cmpf ogt, %7, %8 : vector<8x128xf32>
    %cst_8 = arith.constant 0.00999999977 : f32
    %10 = vector.broadcast %cst_8 : f32 to vector<8x128xf32>
    %11 = arith.mulf %10, %7 : vector<8x128xf32>
    %12 = arith.select %9, %7, %11 : vector<8x128xi1>, vector<8x128xf32>
    %13 = arith.truncf %12 : vector<8x128xf32> to vector<8x128xbf16>
    %c1 = arith.constant 1 : index
    %c0_9 = arith.constant 0 : index
    %c0_10 = arith.constant 0 : index
    %14 = vector.load %arg2[%c1, %c0_9, %c0_10] : memref<3x128x128xbf16, #tpu.memory_space<vmem>>, vector<1x128x128xbf16>
    %15 = vector.shape_cast %14 : vector<1x128x128xbf16> to vector<128x128xbf16>
    %c1_11 = arith.constant 1 : index
    %c0_12 = arith.constant 0 : index
    %c0_13 = arith.constant 0 : index
    %16 = vector.load %arg3[%c1_11, %c0_12, %c0_13] : memref<3x1x128xf32, #tpu.memory_space<vmem>>, vector<1x1x128xf32>
    %17 = vector.shape_cast %16 : vector<1x1x128xf32> to vector<1x128xf32>
    %cst_14 = arith.constant dense<0.000000e+00> : vector<8x128xf32>
    %18 = tpu.matmul %13, %15, %cst_14 {dimension_numbers = #tpu.dot_dimension_numbers<[1], [0], [0], [1], [0, 0, 1, 1], [], []>} : vector<8x128xbf16>, vector<128x128xbf16>, vector<8x128xf32> -> vector<8x128xf32>
    %19 = vector.broadcast %17 : vector<1x128xf32> to vector<8x128xf32>
    %20 = arith.addf %18, %19 : vector<8x128xf32>
    %cst_15 = arith.constant 0.000000e+00 : f32
    %21 = vector.broadcast %cst_15 : f32 to vector<8x128xf32>
    %22 = arith.cmpf ogt, %20, %21 : vector<8x128xf32>
    %cst_16 = arith.constant 0.00999999977 : f32
    %23 = vector.broadcast %cst_16 : f32 to vector<8x128xf32>
    %24 = arith.mulf %23, %20 : vector<8x128xf32>
    %25 = arith.select %22, %20, %24 : vector<8x128xi1>, vector<8x128xf32>
    %26 = arith.truncf %25 : vector<8x128xf32> to vector<8x128xbf16>
    %c2 = arith.constant 2 : index
    %c0_17 = arith.constant 0 : index
    %c0_18 = arith.constant 0 : index
    %27 = vector.load %arg2[%c2, %c0_17, %c0_18] : memref<3x128x128xbf16, #tpu.memory_space<vmem>>, vector<1x128x128xbf16>
    %28 = vector.shape_cast %27 : vector<1x128x128xbf16> to vector<128x128xbf16>
    %c2_19 = arith.constant 2 : index
    %c0_20 = arith.constant 0 : index
    %c0_21 = arith.constant 0 : index
    %29 = vector.load %arg3[%c2_19, %c0_20, %c0_21] : memref<3x1x128xf32, #tpu.memory_space<vmem>>, vector<1x1x128xf32>
    %30 = vector.shape_cast %29 : vector<1x1x128xf32> to vector<1x128xf32>
    %cst_22 = arith.constant dense<0.000000e+00> : vector<8x128xf32>
    %31 = tpu.matmul %26, %28, %cst_22 {dimension_numbers = #tpu.dot_dimension_numbers<[1], [0], [0], [1], [0, 0, 1, 1], [], []>} : vector<8x128xbf16>, vector<128x128xbf16>, vector<8x128xf32> -> vector<8x128xf32>
    %32 = vector.broadcast %30 : vector<1x128xf32> to vector<8x128xf32>
    %33 = arith.addf %31, %32 : vector<8x128xf32>
    %c0_23 = arith.constant 0 : index
    %c0_24 = arith.constant 0 : index
    %34 = vector.load %arg4[%c0_23, %c0_24] : memref<8x128xf32, #tpu.memory_space<vmem>>, vector<8x128xf32>
    tpu.vector_store %arg4[%c0_23, %c0_24], %33 {strides = array<i32>} : memref<8x128xf32, #tpu.memory_space<vmem>>, vector<8x128xf32>,
    return
  }
  func.func @transform_0(%arg0: i32) -> (i32, i32) {
    %c0_i32 = arith.constant 0 : i32
    %c0_i32_0 = arith.constant 0 : i32
    return %arg0, %c0_i32 : i32, i32
  }
  func.func @transform_1(%arg0: i32) -> (i32, i32, i32) {
    %c0_i32 = arith.constant 0 : i32
    %c0_i32_0 = arith.constant 0 : i32
    %c0_i32_1 = arith.constant 0 : i32
    %c0_i32_2 = arith.constant 0 : i32
    return %c0_i32, %c0_i32_0, %c0_i32_1 : i32, i32, i32
  }
  func.func @transform_2(%arg0: i32) -> (i32, i32, i32) {
    %c0_i32 = arith.constant 0 : i32
    %c0_i32_0 = arith.constant 0 : i32
    %c0_i32_1 = arith.constant 0 : i32
    %c0_i32_2 = arith.constant 0 : i32
    return %c0_i32, %c0_i32_0, %c0_i32_1 : i32, i32, i32
  }
  func.func @transform_3(%arg0: i32) -> (i32, i32) {
    %c0_i32 = arith.constant 0 : i32
    %c0_i32_0 = arith.constant 0 : i32
    return %arg0, %c0_i32 : i32, i32
  }
}

</mosaic_0001>

<llo_original>
// kernel: tpu_custom_call.1
$region0: #{tpu_custom_call.1}
  #allocation0 [shape = 'u32[]', space=smem, size = 0x4, offset = 0x4, fixed_abs, tag = 'smem constant byte address 0x4 - core index']
  #allocation1 [shape = 'u32[144,128]{1,0:T(1,128)}', space=vmem, size = 0x12000, scoped, tag = 'internal scratch']
  %s0 = inlined_call_operand.hbm [shape: bf16[8,128], index: 0, kind: input, shape index: {}]
  %s1 = inlined_call_operand.hbm [shape: bf16[3,128,128], index: 1, kind: input, shape index: {}]
  %s2 = inlined_call_operand.vmem [shape: f32[3,1,128], index: 2, kind: input, shape index: {}]
  %s3 = inlined_call_operand.hbm [shape: f32[8,128], index: 3, kind: output, shape index: {}]
  %s4 = sld [smem:[#allocation0]]
  $region30: #{tpu_custom_call.1} parent=0
    _
  %s6 = ssub.s32 1, %s4
  %s7 = scalar_select 0, %s6, %s4
  $region1: #{tpu_custom_call.1} parent=0
    #allocation2 [shape = 'u8[2048]{0}', space=vmem, size = 0x800, scoped, tag = 'input window, operand 0, single buffered']
    #allocation3 [shape = 's32[1]{0}', space=sflag, size = 0x4, scoped, tag = 'scoped memory for tpu_custom_call.1']
    #allocation4 [shape = 's32[1]{0}', space=sflag, size = 0x4, scoped, tag = 'scoped memory for tpu_custom_call.1']
    #allocation5 [shape = 'u8[98304]{0}', space=vmem, size = 0x18000, scoped, tag = 'input window, operand 1, single buffered']
    #allocation6 [shape = 's32[1]{0}', space=sflag, size = 0x4, scoped, tag = 'scoped memory for tpu_custom_call.1']
    #allocation7 [shape = 'u8[4096]{0}', space=vmem, size = 0x1000, scoped, tag = 'output window, operand 0, single buffered']
    %8 = vsyncpa [#allocation3], 0
    %9 = vsyncpa [#allocation6], 0
    %10 = vsyncpa [#allocation4], 0
    // Predicated region
    $region2: #{tpu_custom_call.1} parent=1 // pred_check
      _
    $region3: #{tpu_custom_call.1} parent=1 // pred_check_branch
      %12 = sbr.rel (0) target = $region5
    $region4: #{tpu_custom_call.1} parent=1 // pred_region
      %s14 = ssub.s32 64, 64
      %15 = vsyncadd [#allocation3], %s14
      %s17 = sshll.u32 [#allocation2], 4
      %s18 = int_to_ptr.vmem [resolvable:$true] %s17
      %20 = dma.hbm_to_vmem [thread:$0]  %s0, 64, %s18, [#allocation3]
    $region5: #{tpu_custom_call.1} parent=1 // pred_fallthru
      _
    // Predicated region
    $region6: #{tpu_custom_call.1} parent=1 // pred_check
      _
    $region7: #{tpu_custom_call.1} parent=1 // pred_check_branch
      %22 = sbr.rel (0) target = $region9
    $region8: #{tpu_custom_call.1} parent=1 // pred_region
      %s24 = ssub.s32 3072, 3072
      %25 = vsyncadd [#allocation6], %s24
      %s26 = sshll.u32 [#allocation5], 4
      %s27 = int_to_ptr.vmem [resolvable:$true] %s26
      %32 = dma.hbm_to_vmem [thread:$0]  %s1, 3072, %s27, [#allocation6], 64, 64, 4
    $region9: #{tpu_custom_call.1} parent=1 // pred_fallthru
      _
    // Predicated region
    $region10: #{tpu_custom_call.1} parent=1 // pred_check
      _
    $region11: #{tpu_custom_call.1} parent=1 // pred_check_branch
      %34 = sbr.rel (0) target = $region13
    $region12: #{tpu_custom_call.1} parent=1 // pred_region
      _
    $region13: #{tpu_custom_call.1} parent=1 // pred_fallthru
      _
    // Predicated region
    $region14: #{tpu_custom_call.1} parent=1 // pred_check
      _
    $region15: #{tpu_custom_call.1} parent=1 // pred_check_branch
      %36 = sbr.rel (0) target = $region17
    $region16: #{tpu_custom_call.1} parent=1 // pred_region
      %37 = dma.done [#allocation3], 64
    $region17: #{tpu_custom_call.1} parent=1 // pred_fallthru
      _
    // Predicated region
    $region18: #{tpu_custom_call.1} parent=1 // pred_check
      _
    $region19: #{tpu_custom_call.1} parent=1 // pred_check_branch
      %39 = sbr.rel (0) target = $region21
    $region20: #{tpu_custom_call.1} parent=1 // pred_region
      %40 = dma.done [#allocation6], 3072
    $region21: #{tpu_custom_call.1} parent=1 // pred_fallthru
      _
    %v42 = vld [vmem:[#allocation2] sm:$0xf]
    %v43 = vld [vmem:[#allocation5] sm:$0xf]
    %v44 = vld [vmem:[#allocation5 + $0x4] sm:$0xf]
    %v45 = vld [vmem:[#allocation5 + $0x8] sm:$0xf]
    %v46 = vld [vmem:[#allocation5 + $0xc] sm:$0xf]
    %v47 = vld [vmem:[#allocation5 + $0x10] sm:$0xf]
    %v48 = vld [vmem:[#allocation5 + $0x14] sm:$0xf]
    %v49 = vld [vmem:[#allocation5 + $0x18] sm:$0xf]
    %v50 = vld [vmem:[#allocation5 + $0x1c] sm:$0xf]
    %v51 = vld [vmem:[#allocation5 + $0x20] sm:$0xf]
    %v52 = vld [vmem:[#allocation5 + $0x24] sm:$0xf]
    %v53 = vld [vmem:[#allocation5 + $0x28] sm:$0xf]
    %v54 = vld [vmem:[#allocation5 + $0x2c] sm:$0xf]
    %v55 = vld [vmem:[#allocation5 + $0x30] sm:$0xf]
    %v56 = vld [vmem:[#allocation5 + $0x34] sm:$0xf]
    %v57 = vld [vmem:[#allocation5 + $0x38] sm:$0xf]
    %v58 = vld [vmem:[#allocation5 + $0x3c] sm:$0xf]
    %v59 = vld [vmem:[%s2] sm:$0x1]
    %v61 = vlaneseq
    %v62 = vshrl.u32 %v61, 7
    %v63 = vsub.s32 0, %v62
    %v64 = vrot.slane %v59, %v63
    %v82 = vunpack.c.l.b16 %v43
    %v83 = vunpack.c.l.b16 %v44
    %v84 = vunpack.c.l.b16 %v45
    %v85 = vunpack.c.l.b16 %v46
    %v86 = vunpack.c.l.b16 %v47
    %v87 = vunpack.c.l.b16 %v48
    %v88 = vunpack.c.l.b16 %v49
    %v89 = vunpack.c.l.b16 %v50
    %v90 = vunpack.c.l.b16 %v51
    %v91 = vunpack.c.l.b16 %v52
    %v92 = vunpack.c.l.b16 %v53
    %v93 = vunpack.c.l.b16 %v54
    %v94 = vunpack.c.l.b16 %v55
    %v95 = vunpack.c.l.b16 %v56
    %v96 = vunpack.c.l.b16 %v57
    %v97 = vunpack.c.l.b16 %v58
    %v98 = vpack.c.b16 %v83, %v82
    %v99 = vpack.c.b16 %v85, %v84
    %v100 = vpack.c.b16 %v87, %v86
    %v101 = vpack.c.b16 %v89, %v88
    %v102 = vpack.c.b16 %v91, %v90
    %v103 = vpack.c.b16 %v93, %v92
    %v104 = vpack.c.b16 %v95, %v94
    %v105 = vpack.c.b16 %v97, %v96
    %114 = vmatprep.subr.bf16.mxu0 0
    %115 = vmatpush1.bf16.msra.mxu0 %v98
    %116 = vmatprep.subr.bf16.mxu0 0
    %117 = vmatpush1.bf16.msra.mxu0 %v99
    %118 = vmatprep.subr.bf16.mxu0 0
    %119 = vmatpush1.bf16.msra.mxu0 %v100
    %120 = vmatprep.subr.bf16.mxu0 0
    %121 = vmatpush1.bf16.msra.mxu0 %v101
    %122 = vmatprep.subr.bf16.mxu0 0
    %123 = vmatpush1.bf16.msra.mxu0 %v102
    %124 = vmatprep.subr.bf16.mxu0 0
    %125 = vmatpush1.bf16.msra.mxu0 %v103
    %126 = vmatprep.subr.bf16.mxu0 0
    %127 = vmatpush1.bf16.msra.mxu0 %v104
    %128 = vmatprep.subr.bf16.mxu0 0
    %129 = vmatpush1.bf16.msra.mxu0 %v105
    %130 = vmatprep.subr.bf16.mxu0 0
    %131 = vmatpush1.bf16.msra.mxu0 0
    %132 = vmatprep.subr.bf16.mxu0 0
    %133 = vmatpush1.bf16.msra.mxu0 0
    %134 = vmatprep.subr.bf16.mxu0 0
    %135 = vmatpush1.bf16.msra.mxu0 0
    %136 = vmatprep.subr.bf16.mxu0 0
    %137 = vmatpush1.bf16.msra.mxu0 0
    %138 = vmatprep.subr.bf16.mxu0 0
    %139 = vmatpush1.bf16.msra.mxu0 0
    %140 = vmatprep.subr.bf16.mxu0 0
    %141 = vmatpush1.bf16.msra.mxu0 0
    %142 = vmatprep.subr.bf16.mxu0 0
    %143 = vmatpush1.bf16.msra.mxu0 0
    %144 = vmatprep.subr.bf16.mxu0 0
    %145 = vmatpush1.bf16.msra.mxu0 0
    %146 = vmatprep.mubr.bf16.mxu0 0
    %147 = vmatmul.mubr.bf16.gmra.mrb[0].mxu0 %v42
    %v148 = vpop.f32.mrb[0].mxu0
    %v149 = vadd.f32 %v64, %v148
    %v150 = vpop.f32.mrb[0].mxu0
    %v151 = vpop.f32.mrb[0].mxu0
    %v152 = vpop.f32.mrb[0].mxu0
    %153 = vdwg.mxu0
    %vm154 = vcmp.gt.f32.partialorder %v149, 0.0
    %v155 = vmul.f32 %v149, 0.01
    %v156 = vsel %vm154, %v149, %v155
    %v157 = vpack.c.bf16 %v156, %v156
    %s158 = scalar_lea.vmem [#allocation5], 64
    %v159 = vld [vmem:[%s158] sm:$0xf]
    %v160 = vld [vmem:[%s158 + $0x4] sm:$0xf]
    %v161 = vld [vmem:[%s158 + $0x8] sm:$0xf]
    %v162 = vld [vmem:[%s158 + $0xc] sm:$0xf]
    %v163 = vld [vmem:[%s158 + $0x10] sm:$0xf]
    %v164 = vld [vmem:[%s158 + $0x14] sm:$0xf]
    %v165 = vld [vmem:[%s158 + $0x18] sm:$0xf]
    %v166 = vld [vmem:[%s158 + $0x1c] sm:$0xf]
    %v167 = vld [vmem:[%s158 + $0x20] sm:$0xf]
    %v168 = vld [vmem:[%s158 + $0x24] sm:$0xf]
    %v169 = vld [vmem:[%s158 + $0x28] sm:$0xf]
    %v170 = vld [vmem:[%s158 + $0x2c] sm:$0xf]
    %v171 = vld [vmem:[%s158 + $0x30] sm:$0xf]
    %v172 = vld [vmem:[%s158 + $0x34] sm:$0xf]
    %v173 = vld [vmem:[%s158 + $0x38] sm:$0xf]
    %v174 = vld [vmem:[%s158 + $0x3c] sm:$0xf]
    %s175 = scalar_lea.vmem %s2, 1
    %v176 = vld [vmem:[%s175] sm:$0x1]
    %v178 = vlaneseq
    %v179 = vshrl.u32 %v178, 7
    %v180 = vsub.s32 0, %v179
    %v181 = vrot.slane %v176, %v180
    %v199 = vunpack.c.l.b16 %v159
    %v200 = vunpack.c.l.b16 %v160
    %v201 = vunpack.c.l.b16 %v161
    %v202 = vunpack.c.l.b16 %v162
    %v203 = vunpack.c.l.b16 %v163
    %v204 = vunpack.c.l.b16 %v164
    %v205 = vunpack.c.l.b16 %v165
    %v206 = vunpack.c.l.b16 %v166
    %v207 = vunpack.c.l.b16 %v167
    %v208 = vunpack.c.l.b16 %v168
    %v209 = vunpack.c.l.b16 %v169
    %v210 = vunpack.c.l.b16 %v170
    %v211 = vunpack.c.l.b16 %v171
    %v212 = vunpack.c.l.b16 %v172
    %v213 = vunpack.c.l.b16 %v173
    %v214 = vunpack.c.l.b16 %v174
    %v215 = vpack.c.b16 %v200, %v199
    %v216 = vpack.c.b16 %v202, %v201
    %v217 = vpack.c.b16 %v204, %v203
    %v218 = vpack.c.b16 %v206, %v205
    %v219 = vpack.c.b16 %v208, %v207
    %v220 = vpack.c.b16 %v210, %v209
    %v221 = vpack.c.b16 %v212, %v211
    %v222 = vpack.c.b16 %v214, %v213
    %231 = vmatprep.subr.bf16.mxu0 0
    %232 = vmatpush1.bf16.msra.mxu0 %v215
    %233 = vmatprep.subr.bf16.mxu0 0
    %234 = vmatpush1.bf16.msra.mxu0 %v216
    %235 = vmatprep.subr.bf16.mxu0 0
    %236 = vmatpush1.bf16.msra.mxu0 %v217
    %237 = vmatprep.subr.bf16.mxu0 0
    %238 = vmatpush1.bf16.msra.mxu0 %v218
    %239 = vmatprep.subr.bf16.mxu0 0
    %240 = vmatpush1.bf16.msra.mxu0 %v219
    %241 = vmatprep.subr.bf16.mxu0 0
    %242 = vmatpush1.bf16.msra.mxu0 %v220
    %243 = vmatprep.subr.bf16.mxu0 0
    %244 = vmatpush1.bf16.msra.mxu0 %v221
    %245 = vmatprep.subr.bf16.mxu0 0
    %246 = vmatpush1.bf16.msra.mxu0 %v222
    %247 = vmatprep.subr.bf16.mxu0 0
    %248 = vmatpush1.bf16.msra.mxu0 0
    %249 = vmatprep.subr.bf16.mxu0 0
    %250 = vmatpush1.bf16.msra.mxu0 0
    %251 = vmatprep.subr.bf16.mxu0 0
    %252 = vmatpush1.bf16.msra.mxu0 0
    %253 = vmatprep.subr.bf16.mxu0 0
    %254 = vmatpush1.bf16.msra.mxu0 0
    %255 = vmatprep.subr.bf16.mxu0 0
    %256 = vmatpush1.bf16.msra.mxu0 0
    %257 = vmatprep.subr.bf16.mxu0 0
    %258 = vmatpush1.bf16.msra.mxu0 0
    %259 = vmatprep.subr.bf16.mxu0 0
    %260 = vmatpush1.bf16.msra.mxu0 0
    %261 = vmatprep.subr.bf16.mxu0 0
    %262 = vmatpush1.bf16.msra.mxu0 0
    %263 = vmatprep.mubr.bf16.mxu0 0
    %264 = vmatmul.mubr.bf16.gmra.mrb[0].mxu0 %v157
    %v265 = vpop.f32.mrb[0].mxu0
    %v266 = vadd.f32 %v181, %v265
    %v267 = vpop.f32.mrb[0].mxu0
    %v268 = vpop.f32.mrb[0].mxu0
    %v269 = vpop.f32.mrb[0].mxu0
    %270 = vdwg.mxu0
    %vm271 = vcmp.gt.f32.partialorder %v266, 0.0
    %v272 = vmul.f32 %v266, 0.01
    %v273 = vsel %vm271, %v266, %v272
    %v274 = vpack.c.bf16 %v273, %v273
    %s275 = scalar_lea.vmem [#allocation5], 128
    %v276 = vld [vmem:[%s275] sm:$0xf]
    %v277 = vld [vmem:[%s275 + $0x4] sm:$0xf]
    %v278 = vld [vmem:[%s275 + $0x8] sm:$0xf]
    %v279 = vld [vmem:[%s275 + $0xc] sm:$0xf]
    %v280 = vld [vmem:[%s275 + $0x10] sm:$0xf]
    %v281 = vld [vmem:[%s275 + $0x14] sm:$0xf]
    %v282 = vld [vmem:[%s275 + $0x18] sm:$0xf]
    %v283 = vld [vmem:[%s275 + $0x1c] sm:$0xf]
    %v284 = vld [vmem:[%s275 + $0x20] sm:$0xf]
    %v285 = vld [vmem:[%s275 + $0x24] sm:$0xf]
    %v286 = vld [vmem:[%s275 + $0x28] sm:$0xf]
    %v287 = vld [vmem:[%s275 + $0x2c] sm:$0xf]
    %v288 = vld [vmem:[%s275 + $0x30] sm:$0xf]
    %v289 = vld [vmem:[%s275 + $0x34] sm:$0xf]
    %v290 = vld [vmem:[%s275 + $0x38] sm:$0xf]
    %v291 = vld [vmem:[%s275 + $0x3c] sm:$0xf]
    %s292 = scalar_lea.vmem %s2, 2
    %v293 = vld [vmem:[%s292] sm:$0x1]
    %v295 = vlaneseq
    %v296 = vshrl.u32 %v295, 7
    %v297 = vsub.s32 0, %v296
    %v298 = vrot.slane %v293, %v297
    %v316 = vunpack.c.l.b16 %v276
    %v317 = vunpack.c.l.b16 %v277
    %v318 = vunpack.c.l.b16 %v278
    %v319 = vunpack.c.l.b16 %v279
    %v320 = vunpack.c.l.b16 %v280
    %v321 = vunpack.c.l.b16 %v281
    %v322 = vunpack.c.l.b16 %v282
    %v323 = vunpack.c.l.b16 %v283
    %v324 = vunpack.c.l.b16 %v284
    %v325 = vunpack.c.l.b16 %v285
    %v326 = vunpack.c.l.b16 %v286
    %v327 = vunpack.c.l.b16 %v287
    %v328 = vunpack.c.l.b16 %v288
    %v329 = vunpack.c.l.b16 %v289
    %v330 = vunpack.c.l.b16 %v290
    %v331 = vunpack.c.l.b16 %v291
    %v332 = vpack.c.b16 %v317, %v316
    %v333 = vpack.c.b16 %v319, %v318
    %v334 = vpack.c.b16 %v321, %v320
    %v335 = vpack.c.b16 %v323, %v322
    %v336 = vpack.c.b16 %v325, %v324
    %v337 = vpack.c.b16 %v327, %v326
    %v338 = vpack.c.b16 %v329, %v328
    %v339 = vpack.c.b16 %v331, %v330
    %348 = vmatprep.subr.bf16.mxu0 0
    %349 = vmatpush1.bf16.msra.mxu0 %v332
    %350 = vmatprep.subr.bf16.mxu0 0
    %351 = vmatpush1.bf16.msra.mxu0 %v333
    %352 = vmatprep.subr.bf16.mxu0 0
    %353 = vmatpush1.bf16.msra.mxu0 %v334
    %354 = vmatprep.subr.bf16.mxu0 0
    %355 = vmatpush1.bf16.msra.mxu0 %v335
    %356 = vmatprep.subr.bf16.mxu0 0
    %357 = vmatpush1.bf16.msra.mxu0 %v336
    %358 = vmatprep.subr.bf16.mxu0 0
    %359 = vmatpush1.bf16.msra.mxu0 %v337
    %360 = vmatprep.subr.bf16.mxu0 0
    %361 = vmatpush1.bf16.msra.mxu0 %v338
    %362 = vmatprep.subr.bf16.mxu0 0
    %363 = vmatpush1.bf16.msra.mxu0 %v339
    %364 = vmatprep.subr.bf16.mxu0 0
    %365 = vmatpush1.bf16.msra.mxu0 0
    %366 = vmatprep.subr.bf16.mxu0 0
    %367 = vmatpush1.bf16.msra.mxu0 0
    %368 = vmatprep.subr.bf16.mxu0 0
    %369 = vmatpush1.bf16.msra.mxu0 0
    %370 = vmatprep.subr.bf16.mxu0 0
    %371 = vmatpush1.bf16.msra.mxu0 0
    %372 = vmatprep.subr.bf16.mxu0 0
    %373 = vmatpush1.bf16.msra.mxu0 0
    %374 = vmatprep.subr.bf16.mxu0 0
    %375 = vmatpush1.bf16.msra.mxu0 0
    %376 = vmatprep.subr.bf16.mxu0 0
    %377 = vmatpush1.bf16.msra.mxu0 0
    %378 = vmatprep.subr.bf16.mxu0 0
    %379 = vmatpush1.bf16.msra.mxu0 0
    %380 = vmatprep.mubr.bf16.mxu0 0
    %381 = vmatmul.mubr.bf16.gmra.mrb[0].mxu0 %v274
    %v382 = vpop.f32.mrb[0].mxu0
    %v383 = vadd.f32 %v298, %v382
    %v384 = vpop.f32.mrb[0].mxu0
    %v385 = vpop.f32.mrb[0].mxu0
    %v386 = vpop.f32.mrb[0].mxu0
    %387 = vdwg.mxu0
    %388 = vst [vmem:[#allocation7] sm:$0xff] %v383
    // Predicated region
    $region22: #{tpu_custom_call.1} parent=1 // pred_check
      _
    $region23: #{tpu_custom_call.1} parent=1 // pred_check_branch
      %390 = sbr.rel (0) target = $region25
    $region24: #{tpu_custom_call.1} parent=1 // pred_region
      %s392 = ssub.s32 128, 128
      %393 = vsyncadd [#allocation4], %s392
      %s395 = sshll.u32 [#allocation7], 4
      %s396 = int_to_ptr.vmem [resolvable:$true] %s395
      %398 = dma.vmem_to_hbm [thread:$0]  %s396, 128, %s3, [#allocation4]
    $region25: #{tpu_custom_call.1} parent=1 // pred_fallthru
      _
    // Predicated region
    $region26: #{tpu_custom_call.1} parent=1 // pred_check
      _
    $region27: #{tpu_custom_call.1} parent=1 // pred_check_branch
      %400 = sbr.rel (0) target = $region29
    $region28: #{tpu_custom_call.1} parent=1 // pred_region
      %401 = dma.done [#allocation4], 128
    $region29: #{tpu_custom_call.1} parent=1 // pred_fallthru
      _
    %402 = vsyncpa [#allocation3], 1
    %403 = vsyncpa [#allocation6], 1
    %404 = vsyncpa [#allocation4], 1

</llo_original>
